<compile_context>
chip_gen: v7x
topology: tpu7x:2x2x1
jax: 0.10.0
libtpu: 0.0.40
codegen_flags: <defaults>
</compile_context>

<pallas_src>
import functools

import jax
import jax.numpy as jnp
from jax.experimental import pallas as pl
from jax.experimental.pallas import tpu as pltpu

LANE = 128  # each head's output occupies one 128-lane slab of the fused output


def _heads_kernel(x_ref, w1_ref, b1_ref, w2_ref, b2_ref, out_ref):
    # x: (B, D) f32 | w1: (D, 2H) bf16 | b1: (1, 2H) f32
    # w2: (2H, 2*LANE) bf16 block-diagonal | b2: (1, 2*LANE) f32
    x = x_ref[...]
    w1 = w1_ref[...].astype(jnp.float32)          # bf16 over DMA, f32 on the MXU
    h = jnp.dot(x, w1, preferred_element_type=jnp.float32)
    h = jnp.maximum(h + b1_ref[...], 0.0)         # (B, 2H): ReLU for both heads at once

    w2 = w2_ref[...].astype(jnp.float32)
    out = jnp.dot(h, w2, preferred_element_type=jnp.float32)
    out_ref[...] = (out + b2_ref[...]).astype(out_ref.dtype)   # (B, 2*LANE) dense store


def prepare_heads_params(w1, b1, w2, b2, wd1, bd1, wd2, bd2,
                         weight_dtype=jnp.bfloat16):
    """One-time parameter conversion (outside the per-call hot path).

    Builds the fused first layer [W1 | Wd1], the block-diagonal lane-padded
    second layer, and casts weights to bf16.
    """
    D, H = w1.shape
    Dd, Hd = wd1.shape
    C, Cd = w2.shape[1], wd2.shape[1]
    assert D == Dd, "both heads consume the same embedding"
    assert C <= LANE and Cd <= LANE, "class counts must fit in one 128-lane slab"

    # Fused first layer: (D, H + Hd)
    wcat1 = jnp.concatenate([w1, wd1], axis=1).astype(weight_dtype)
    bcat1 = jnp.concatenate([b1, bd1], axis=1).astype(jnp.float32)

    # Fused block-diagonal second layer, padded to 2*LANE lane-dense outputs.
    wcat2 = jnp.zeros((H + Hd, 2 * LANE), jnp.float32)
    wcat2 = wcat2.at[:H, :C].set(w2)
    wcat2 = wcat2.at[H:, LANE:LANE + Cd].set(wd2)
    wcat2 = wcat2.astype(weight_dtype)

    bcat2 = jnp.zeros((1, 2 * LANE), jnp.float32)
    bcat2 = bcat2.at[:, :C].set(b2[0])
    bcat2 = bcat2.at[:, LANE:LANE + Cd].set(bd2[0])

    return (wcat1, bcat1, wcat2, bcat2), (C, Cd)


@functools.partial(jax.jit, static_argnames=("num_classes", "num_domains"))
def classifier_heads(emb, wcat1, bcat1, wcat2, bcat2, *, num_classes, num_domains):
    """Returns (cls_s, domain_s) for Model.forward's xt1=None path."""
    B, D = emb.shape
    H2 = wcat1.shape[1]
    N2 = wcat2.shape[1]          # 2 * LANE

    flops = 2 * B * D * H2 + 2 * B * H2 * N2
    bytes_accessed = (emb.size * emb.dtype.itemsize
                      + wcat1.size * wcat1.dtype.itemsize
                      + bcat1.size * bcat1.dtype.itemsize
                      + wcat2.size * wcat2.dtype.itemsize
                      + bcat2.size * bcat2.dtype.itemsize
                      + B * N2 * 4)

    vmem = pl.BlockSpec(memory_space=pltpu.MemorySpace.VMEM)
    out = pl.pallas_call(
        _heads_kernel,
        out_shape=jax.ShapeDtypeStruct((B, N2), jnp.float32),
        in_specs=[vmem] * 5,
        out_specs=vmem,
        cost_estimate=pl.CostEstimate(flops=flops, transcendentals=0,
                                      bytes_accessed=bytes_accessed),
    )(emb, wcat1, bcat1, wcat2, bcat2)

    # Static slices back to the true class counts (lanes beyond them are exact 0s).
    return out[:, :num_classes], out[:, LANE:LANE + num_domains]


def _init_linear(key, fan_in, fan_out):
    # Mimic PyTorch nn.Linear init: uniform(-1/sqrt(fan_in), 1/sqrt(fan_in)).
    kw, kb = jax.random.split(key)
    bound = 1.0 / jnp.sqrt(fan_in)
    w = jax.random.uniform(kw, (fan_in, fan_out), jnp.float32, -bound, bound)
    b = jax.random.uniform(kb, (1, fan_out), jnp.float32, -bound, bound)
    return w, b


if __name__ == "__main__":
    # Shapes implied by the module: emb_s_q is (B, 256*2); LabelClassifier is
    # 512 -> 256 -> num_classes; DomainClassifier is 512 -> 256 -> 2.
    batch, input_dim, hidden_dim, num_classes = 8, 512, 256, 10
    dom_hidden, dom_classes = 256, 2

    key = jax.random.PRNGKey(0)
    kx, k1, k2, k3, k4 = jax.random.split(key, 5)
    emb = jax.random.normal(kx, (batch, input_dim), jnp.float32)

    w1, b1 = _init_linear(k1, input_dim, hidden_dim)        # label head L1
    w2, b2 = _init_linear(k2, hidden_dim, num_classes)      # label head L2
    wd1, bd1 = _init_linear(k3, input_dim, dom_hidden)      # domain head L1
    wd2, bd2 = _init_linear(k4, dom_hidden, dom_classes)    # domain head L2

    # One-time parameter conversion (fuse + pad + bf16), outside the hot path.
    (wcat1, bcat1, wcat2, bcat2), (C, Cd) = prepare_heads_params(
        w1, b1, w2, b2, wd1, bd1, wd2, bd2)

    cls_s, domain_s = classifier_heads(emb, wcat1, bcat1, wcat2, bcat2,
                                       num_classes=C, num_domains=Cd)
    cls_s, domain_s = jax.block_until_ready((cls_s, domain_s))

    # Pure-JAX reference of the forward semantics (weights quantized to bf16
    # exactly as shipped to the kernel, so the check isolates kernel plumbing).
    def q(w):
        return w.astype(jnp.bfloat16).astype(jnp.float32)

    cls_ref = jnp.maximum(emb @ q(w1) + b1, 0.0) @ q(w2) + b2
    dom_ref = jnp.maximum(emb @ q(wd1) + bd1, 0.0) @ q(wd2) + bd2

    assert cls_s.shape == (batch, num_classes)
    assert domain_s.shape == (batch, dom_classes)
    assert jnp.allclose(cls_s, cls_ref, atol=2e-3, rtol=2e-3)
    assert jnp.allclose(domain_s, dom_ref, atol=2e-3, rtol=2e-3)

    print("KERNEL_OK")
</pallas_src>

<mosaic_0001>
module attributes {stable_mosaic.version = 11 : i64} {
  func.func @_heads_kernel(%arg0: memref<8x512xf32, #tpu.memory_space<vmem>>, %arg1: memref<512x512xbf16, #tpu.memory_space<vmem>>, %arg2: memref<1x512xf32, #tpu.memory_space<vmem>>, %arg3: memref<512x256xbf16, #tpu.memory_space<vmem>>, %arg4: memref<1x256xf32, #tpu.memory_space<vmem>>, %arg5: memref<8x256xf32, #tpu.memory_space<vmem>>) attributes {dimension_semantics = [], scalar_prefetch = 0 : i64, scratch_operands = 0 : i64, tpu.core_type = #tpu.core_type<tc>} {
    %c0 = arith.constant 0 : index
    %c0_0 = arith.constant 0 : index
    %0 = vector.load %arg0[%c0, %c0_0] : memref<8x512xf32, #tpu.memory_space<vmem>>, vector<8x512xf32>
    %c0_1 = arith.constant 0 : index
    %c0_2 = arith.constant 0 : index
    %1 = vector.load %arg1[%c0_1, %c0_2] : memref<512x512xbf16, #tpu.memory_space<vmem>>, vector<512x512xbf16>
    %2 = arith.extf %1 : vector<512x512xbf16> to vector<512x512xf32>
    %cst = arith.constant dense<0.000000e+00> : vector<8x512xf32>
    %3 = tpu.matmul %0, %2, %cst {dimension_numbers = #tpu.dot_dimension_numbers<[1], [0], [0], [1], [0, 0, 1, 1], [], []>} : vector<8x512xf32>, vector<512x512xf32>, vector<8x512xf32> -> vector<8x512xf32>
    %c0_3 = arith.constant 0 : index
    %c0_4 = arith.constant 0 : index
    %4 = vector.load %arg2[%c0_3, %c0_4] : memref<1x512xf32, #tpu.memory_space<vmem>>, vector<1x512xf32>
    %5 = vector.broadcast %4 : vector<1x512xf32> to vector<8x512xf32>
    %6 = arith.addf %3, %5 : vector<8x512xf32>
    %cst_5 = arith.constant 0.000000e+00 : f32
    %7 = vector.broadcast %cst_5 : f32 to vector<8x512xf32>
    %8 = arith.maximumf %6, %7 : vector<8x512xf32>
    %c0_6 = arith.constant 0 : index
    %c0_7 = arith.constant 0 : index
    %9 = vector.load %arg3[%c0_6, %c0_7] : memref<512x256xbf16, #tpu.memory_space<vmem>>, vector<512x256xbf16>
    %10 = arith.extf %9 : vector<512x256xbf16> to vector<512x256xf32>
    %cst_8 = arith.constant dense<0.000000e+00> : vector<8x256xf32>
    %11 = tpu.matmul %8, %10, %cst_8 {dimension_numbers = #tpu.dot_dimension_numbers<[1], [0], [0], [1], [0, 0, 1, 1], [], []>} : vector<8x512xf32>, vector<512x256xf32>, vector<8x256xf32> -> vector<8x256xf32>
    %c0_9 = arith.constant 0 : index
    %c0_10 = arith.constant 0 : index
    %12 = vector.load %arg4[%c0_9, %c0_10] : memref<1x256xf32, #tpu.memory_space<vmem>>, vector<1x256xf32>
    %13 = vector.broadcast %12 : vector<1x256xf32> to vector<8x256xf32>
    %14 = arith.addf %11, %13 : vector<8x256xf32>
    %c0_11 = arith.constant 0 : index
    %c0_12 = arith.constant 0 : index
    %15 = vector.load %arg5[%c0_11, %c0_12] : memref<8x256xf32, #tpu.memory_space<vmem>>, vector<8x256xf32>
    tpu.vector_store %arg5[%c0_11, %c0_12], %14 {strides = array<i32>} : memref<8x256xf32, #tpu.memory_space<vmem>>, vector<8x256xf32>,
    return
  }
}

</mosaic_0001>

<llo_original>
// kernel: classifier_heads.1
$region0: #{classifier_heads.1}
  #allocation0 [shape = 'u32[]', space=smem, size = 0x4, offset = 0x4, fixed_abs, tag = 'smem constant byte address 0x4 - core index']
  #allocation1 [shape = 'u32[144,128]{1,0:T(1,128)}', space=vmem, size = 0x12000, scoped, tag = 'internal scratch']
  %s0 = inlined_call_operand.hbm [shape: f32[8,512], index: 0, kind: input, shape index: {}]
  %s1 = inlined_call_operand.hbm [shape: bf16[512,512], index: 1, kind: input, shape index: {}]
  %s2 = inlined_call_operand.vmem [shape: f32[1,512], index: 2, kind: input, shape index: {}]
  %s3 = inlined_call_operand.hbm [shape: bf16[512,256], index: 3, kind: input, shape index: {}]
  %s4 = inlined_call_operand.vmem [shape: f32[1,256], index: 4, kind: input, shape index: {}]
  %s5 = inlined_call_operand.vmem [shape: f32[8,256], index: 5, kind: output, shape index: {}]
  %s6 = sld [smem:[#allocation0]]
  $region42: #{classifier_heads.1} parent=0
    _
  %s8 = ssub.s32 1, %s6
  %s9 = scalar_select 0, %s8, %s6
  $region1: #{classifier_heads.1} parent=0
    #allocation2 [shape = 'u8[16384]{0}', space=vmem, size = 0x4000, scoped, tag = 'input window, operand 0, single buffered']
    #allocation3 [shape = 's32[1]{0}', space=sflag, size = 0x4, scoped, tag = 'scoped memory for classifier_heads.1']
    #allocation4 [shape = 'u8[524288]{0}', space=vmem, size = 0x80000, scoped, tag = 'input window, operand 1, single buffered']
    #allocation5 [shape = 's32[1]{0}', space=sflag, size = 0x4, scoped, tag = 'scoped memory for classifier_heads.1']
    #allocation6 [shape = 'u8[262144]{0}', space=vmem, size = 0x40000, scoped, tag = 'input window, operand 3, single buffered']
    %10 = vsyncpa [#allocation3], 0
    %11 = vsyncpa [#allocation5], 0
    // Predicated region
    $region2: #{classifier_heads.1} parent=1 // pred_check
      _
    $region3: #{classifier_heads.1} parent=1 // pred_check_branch
      %13 = sbr.rel (0) target = $region5
    $region4: #{classifier_heads.1} parent=1 // pred_region
      %s15 = ssub.s32 512, 512
      %16 = vsyncadd [#allocation3], %s15
      %s18 = sshll.u32 [#allocation2], 4
      %s19 = int_to_ptr.vmem [resolvable:$true] %s18
      %21 = dma.hbm_to_vmem [thread:$0]  %s0, 512, %s19, [#allocation3]
    $region5: #{classifier_heads.1} parent=1 // pred_fallthru
      _
    // Predicated region
    $region6: #{classifier_heads.1} parent=1 // pred_check
      _
    $region7: #{classifier_heads.1} parent=1 // pred_check_branch
      %23 = sbr.rel (0) target = $region9
    $region8: #{classifier_heads.1} parent=1 // pred_region
      %s25 = ssub.s32 16384, 16384
      %26 = vsyncadd [#allocation5], %s25
      %s27 = sshll.u32 [#allocation4], 4
      %s28 = int_to_ptr.vmem [resolvable:$true] %s27
      %33 = dma.hbm_to_vmem [thread:$0]  %s1, 16384, %s28, [#allocation5], 256, 256, 16
    $region9: #{classifier_heads.1} parent=1 // pred_fallthru
      _
    // Predicated region
    $region10: #{classifier_heads.1} parent=1 // pred_check
      _
    $region11: #{classifier_heads.1} parent=1 // pred_check_branch
      %35 = sbr.rel (0) target = $region13
    $region12: #{classifier_heads.1} parent=1 // pred_region
      _
    $region13: #{classifier_heads.1} parent=1 // pred_fallthru
      _
    // Predicated region
    $region14: #{classifier_heads.1} parent=1 // pred_check
      _
    $region15: #{classifier_heads.1} parent=1 // pred_check_branch
      %37 = sbr.rel (0) target = $region17
    $region16: #{classifier_heads.1} parent=1 // pred_region
      %s39 = ssub.s32 8192, 8192
      %40 = vsyncadd [#allocation5], %s39
      %s41 = sshll.u32 [#allocation6], 4
      %s42 = int_to_ptr.vmem [resolvable:$true] %s41
      %47 = dma.hbm_to_vmem [thread:$0]  %s3, 8192, %s42, [#allocation5], 128, 128, 8
    $region17: #{classifier_heads.1} parent=1 // pred_fallthru
      _
    // Predicated region
    $region18: #{classifier_heads.1} parent=1 // pred_check
      _
    $region19: #{classifier_heads.1} parent=1 // pred_check_branch
      %49 = sbr.rel (0) target = $region21
    $region20: #{classifier_heads.1} parent=1 // pred_region
      _
    $region21: #{classifier_heads.1} parent=1 // pred_fallthru
      _
    // Predicated region
    $region22: #{classifier_heads.1} parent=1 // pred_check
      _
    $region23: #{classifier_heads.1} parent=1 // pred_check_branch
      %51 = sbr.rel (0) target = $region25
    $region24: #{classifier_heads.1} parent=1 // pred_region
      %52 = dma.done [#allocation3], 512
    $region25: #{classifier_heads.1} parent=1 // pred_fallthru
      _
    // Predicated region
    $region26: #{classifier_heads.1} parent=1 // pred_check
      _
    $region27: #{classifier_heads.1} parent=1 // pred_check_branch
      %54 = sbr.rel (0) target = $region29
    $region28: #{classifier_heads.1} parent=1 // pred_region
      %55 = dma.done [#allocation5], 16384
    $region29: #{classifier_heads.1} parent=1 // pred_fallthru
      _
    // Predicated region
    $region30: #{classifier_heads.1} parent=1 // pred_check
      _
    $region31: #{classifier_heads.1} parent=1 // pred_check_branch
      %57 = sbr.rel (0) target = $region33
    $region32: #{classifier_heads.1} parent=1 // pred_region
      %58 = dma.done [#allocation5], 8192
    $region33: #{classifier_heads.1} parent=1 // pred_fallthru
      _
    %v59 = vld [vmem:[#allocation2] sm:$0xff]
    %v60 = vld [vmem:[#allocation2 + $0x8] sm:$0xff]
    %v61 = vld [vmem:[#allocation2 + $0x10] sm:$0xff]
    %v62 = vld [vmem:[#allocation2 + $0x18] sm:$0xff]
    %v63 = vld [vmem:[#allocation4] sm:$0xff]
    %v64 = vld [vmem:[#allocation4 + $0x8] sm:$0xff]
    %v65 = vld [vmem:[#allocation4 + $0x10] sm:$0xff]
    %v66 = vld [vmem:[#allocation4 + $0x18] sm:$0xff]
    %v67 = vld [vmem:[#allocation4 + $0x20] sm:$0xff]
    %v68 = vld [vmem:[#allocation4 + $0x28] sm:$0xff]
    %v69 = vld [vmem:[#allocation4 + $0x30] sm:$0xff]
    %v70 = vld [vmem:[#allocation4 + $0x38] sm:$0xff]
    %v71 = vld [vmem:[#allocation4 + $0x40] sm:$0xff]
    %v72 = vld [vmem:[#allocation4 + $0x48] sm:$0xff]
    %v73 = vld [vmem:[#allocation4 + $0x50] sm:$0xff]
    %v74 = vld [vmem:[#allocation4 + $0x58] sm:$0xff]
    %v75 = vld [vmem:[#allocation4 + $0x60] sm:$0xff]
    %v76 = vld [vmem:[#allocation4 + $0x68] sm:$0xff]
    %v77 = vld [vmem:[#allocation4 + $0x70] sm:$0xff]
    %v78 = vld [vmem:[#allocation4 + $0x78] sm:$0xff]
    %v79 = vld [vmem:[#allocation4 + $0x80] sm:$0xff]
    %v80 = vld [vmem:[#allocation4 + $0x88] sm:$0xff]
    %v81 = vld [vmem:[#allocation4 + $0x90] sm:$0xff]
    %v82 = vld [vmem:[#allocation4 + $0x98] sm:$0xff]
    %v83 = vld [vmem:[#allocation4 + $0xa0] sm:$0xff]
    %v84 = vld [vmem:[#allocation4 + $0xa8] sm:$0xff]
    %v85 = vld [vmem:[#allocation4 + $0xb0] sm:$0xff]
    %v86 = vld [vmem:[#allocation4 + $0xb8] sm:$0xff]
    %v87 = vld [vmem:[#allocation4 + $0xc0] sm:$0xff]
    %v88 = vld [vmem:[#allocation4 + $0xc8] sm:$0xff]
    %v89 = vld [vmem:[#allocation4 + $0xd0] sm:$0xff]
    %v90 = vld [vmem:[#allocation4 + $0xd8] sm:$0xff]
    %v91 = vld [vmem:[#allocation4 + $0xe0] sm:$0xff]
    %v92 = vld [vmem:[#allocation4 + $0xe8] sm:$0xff]
    %v93 = vld [vmem:[#allocation4 + $0xf0] sm:$0xff]
    %v94 = vld [vmem:[#allocation4 + $0xf8] sm:$0xff]
    %v95 = vld [vmem:[#allocation4 + $0x100] sm:$0xff]
    %v96 = vld [vmem:[#allocation4 + $0x108] sm:$0xff]
    %v97 = vld [vmem:[#allocation4 + $0x110] sm:$0xff]
    %v98 = vld [vmem:[#allocation4 + $0x118] sm:$0xff]
    %v99 = vld [vmem:[#allocation4 + $0x120] sm:$0xff]
    %v100 = vld [vmem:[#allocation4 + $0x128] sm:$0xff]
    %v101 = vld [vmem:[#allocation4 + $0x130] sm:$0xff]
    %v102 = vld [vmem:[#allocation4 + $0x138] sm:$0xff]
    %v103 = vld [vmem:[#allocation4 + $0x140] sm:$0xff]
    %v104 = vld [vmem:[#allocation4 + $0x148] sm:$0xff]
    %v105 = vld [vmem:[#allocation4 + $0x150] sm:$0xff]
    %v106 = vld [vmem:[#allocation4 + $0x158] sm:$0xff]
    %v107 = vld [vmem:[#allocation4 + $0x160] sm:$0xff]
    %v108 = vld [vmem:[#allocation4 + $0x168] sm:$0xff]
    %v109 = vld [vmem:[#allocation4 + $0x170] sm:$0xff]
    %v110 = vld [vmem:[#allocation4 + $0x178] sm:$0xff]
    %v111 = vld [vmem:[#allocation4 + $0x180] sm:$0xff]
    %v112 = vld [vmem:[#allocation4 + $0x188] sm:$0xff]
    %v113 = vld [vmem:[#allocation4 + $0x190] sm:$0xff]
    %v114 = vld [vmem:[#allocation4 + $0x198] sm:$0xff]
    %v115 = vld [vmem:[#allocation4 + $0x1a0] sm:$0xff]
    %v116 = vld [vmem:[#allocation4 + $0x1a8] sm:$0xff]
    %v117 = vld [vmem:[#allocation4 + $0x1b0] sm:$0xff]
    %v118 = vld [vmem:[#allocation4 + $0x1b8] sm:$0xff]
    %v119 = vld [vmem:[#allocation4 + $0x1c0] sm:$0xff]
    %v120 = vld [vmem:[#allocation4 + $0x1c8] sm:$0xff]
    %v121 = vld [vmem:[#allocation4 + $0x1d0] sm:$0xff]
    %v122 = vld [vmem:[#allocation4 + $0x1d8] sm:$0xff]
    %v123 = vld [vmem:[#allocation4 + $0x1e0] sm:$0xff]
    %v124 = vld [vmem:[#allocation4 + $0x1e8] sm:$0xff]
    %v125 = vld [vmem:[#allocation4 + $0x1f0] sm:$0xff]
    %v126 = vld [vmem:[#allocation4 + $0x1f8] sm:$0xff]
    %v127 = vld [vmem:[#allocation4 + $0x200] sm:$0xff]
    %v128 = vld [vmem:[#allocation4 + $0x208] sm:$0xff]
    %v129 = vld [vmem:[#allocation4 + $0x210] sm:$0xff]
    %v130 = vld [vmem:[#allocation4 + $0x218] sm:$0xff]
    %v131 = vld [vmem:[#allocation4 + $0x220] sm:$0xff]
    %v132 = vld [vmem:[#allocation4 + $0x228] sm:$0xff]
    %v133 = vld [vmem:[#allocation4 + $0x230] sm:$0xff]
    %v134 = vld [vmem:[#allocation4 + $0x238] sm:$0xff]
    %v135 = vld [vmem:[#allocation4 + $0x240] sm:$0xff]
    %v136 = vld [vmem:[#allocation4 + $0x248] sm:$0xff]
    %v137 = vld [vmem:[#allocation4 + $0x250] sm:$0xff]
    %v138 = vld [vmem:[#allocation4 + $0x258] sm:$0xff]
    %v139 = vld [vmem:[#allocation4 + $0x260] sm:$0xff]
    %v140 = vld [vmem:[#allocation4 + $0x268] sm:$0xff]
    %v141 = vld [vmem:[#allocation4 + $0x270] sm:$0xff]
    %v142 = vld [vmem:[#allocation4 + $0x278] sm:$0xff]
    %v143 = vld [vmem:[#allocation4 + $0x280] sm:$0xff]
    %v144 = vld [vmem:[#allocation4 + $0x288] sm:$0xff]
    %v145 = vld [vmem:[#allocation4 + $0x290] sm:$0xff]
    %v146 = vld [vmem:[#allocation4 + $0x298] sm:$0xff]
    %v147 = vld [vmem:[#allocation4 + $0x2a0] sm:$0xff]
    %v148 = vld [vmem:[#allocation4 + $0x2a8] sm:$0xff]
    %v149 = vld [vmem:[#allocation4 + $0x2b0] sm:$0xff]
    %v150 = vld [vmem:[#allocation4 + $0x2b8] sm:$0xff]
    %v151 = vld [vmem:[#allocation4 + $0x2c0] sm:$0xff]
    %v152 = vld [vmem:[#allocation4 + $0x2c8] sm:$0xff]
    %v153 = vld [vmem:[#allocation4 + $0x2d0] sm:$0xff]
    %v154 = vld [vmem:[#allocation4 + $0x2d8] sm:$0xff]
    %v155 = vld [vmem:[#allocation4 + $0x2e0] sm:$0xff]
    %v156 = vld [vmem:[#allocation4 + $0x2e8] sm:$0xff]
    %v157 = vld [vmem:[#allocation4 + $0x2f0] sm:$0xff]
    %v158 = vld [vmem:[#allocation4 + $0x2f8] sm:$0xff]
    %v159 = vld [vmem:[#allocation4 + $0x300] sm:$0xff]
    %v160 = vld [vmem:[#allocation4 + $0x308] sm:$0xff]
    %v161 = vld [vmem:[#allocation4 + $0x310] sm:$0xff]
    %v162 = vld [vmem:[#allocation4 + $0x318] sm:$0xff]
    %v163 = vld [vmem:[#allocation4 + $0x320] sm:$0xff]
    %v164 = vld [vmem:[#allocation4 + $0x328] sm:$0xff]
    %v165 = vld [vmem:[#allocation4 + $0x330] sm:$0xff]
    %v166 = vld [vmem:[#allocation4 + $0x338] sm:$0xff]
    %v167 = vld [vmem:[#allocation4 + $0x340] sm:$0xff]
    %v168 = vld [vmem:[#allocation4 + $0x348] sm:$0xff]
    %v169 = vld [vmem:[#allocation4 + $0x350] sm:$0xff]
    %v170 = vld [vmem:[#allocation4 + $0x358] sm:$0xff]
    %v171 = vld [vmem:[#allocation4 + $0x360] sm:$0xff]
    %v172 = vld [vmem:[#allocation4 + $0x368] sm:$0xff]
    %v173 = vld [vmem:[#allocation4 + $0x370] sm:$0xff]
    %v174 = vld [vmem:[#allocation4 + $0x378] sm:$0xff]
    %v175 = vld [vmem:[#allocation4 + $0x380] sm:$0xff]
    %v176 = vld [vmem:[#allocation4 + $0x388] sm:$0xff]
    %v177 = vld [vmem:[#allocation4 + $0x390] sm:$0xff]
    %v178 = vld [vmem:[#allocation4 + $0x398] sm:$0xff]
    %v179 = vld [vmem:[#allocation4 + $0x3a0] sm:$0xff]
    %v180 = vld [vmem:[#allocation4 + $0x3a8] sm:$0xff]
    %v181 = vld [vmem:[#allocation4 + $0x3b0] sm:$0xff]
    %v182 = vld [vmem:[#allocation4 + $0x3b8] sm:$0xff]
    %v183 = vld [vmem:[#allocation4 + $0x3c0] sm:$0xff]
    %v184 = vld [vmem:[#allocation4 + $0x3c8] sm:$0xff]
    %v185 = vld [vmem:[#allocation4 + $0x3d0] sm:$0xff]
    %v186 = vld [vmem:[#allocation4 + $0x3d8] sm:$0xff]
    %v187 = vld [vmem:[#allocation4 + $0x3e0] sm:$0xff]
    %v188 = vld [vmem:[#allocation4 + $0x3e8] sm:$0xff]
    %v189 = vld [vmem:[#allocation4 + $0x3f0] sm:$0xff]
    %v190 = vld [vmem:[#allocation4 + $0x3f8] sm:$0xff]
    %v191 = vunpack.c.l.bf16 %v63
    %v192 = vunpack.c.h.bf16 %v63
    %v193 = vunpack.c.l.bf16 %v64
    %v194 = vunpack.c.h.bf16 %v64
    %v195 = vunpack.c.l.bf16 %v65
    %v196 = vunpack.c.h.bf16 %v65
    %v197 = vunpack.c.l.bf16 %v66
    %v198 = vunpack.c.h.bf16 %v66
    %v199 = vunpack.c.l.bf16 %v67
    %v200 = vunpack.c.h.bf16 %v67
    %v201 = vunpack.c.l.bf16 %v68
    %v202 = vunpack.c.h.bf16 %v68
    %v203 = vunpack.c.l.bf16 %v69
    %v204 = vunpack.c.h.bf16 %v69
    %v205 = vunpack.c.l.bf16 %v70
    %v206 = vunpack.c.h.bf16 %v70
    %v207 = vunpack.c.l.bf16 %v71
    %v208 = vunpack.c.h.bf16 %v71
    %v209 = vunpack.c.l.bf16 %v72
    %v210 = vunpack.c.h.bf16 %v72
    %v211 = vunpack.c.l.bf16 %v73
    %v212 = vunpack.c.h.bf16 %v73
    %v213 = vunpack.c.l.bf16 %v74
    %v214 = vunpack.c.h.bf16 %v74
    %v215 = vunpack.c.l.bf16 %v75
    %v216 = vunpack.c.h.bf16 %v75
    %v217 = vunpack.c.l.bf16 %v76
    %v218 = vunpack.c.h.bf16 %v76
    %v219 = vunpack.c.l.bf16 %v77
    %v220 = vunpack.c.h.bf16 %v77
    %v221 = vunpack.c.l.bf16 %v78
    %v222 = vunpack.c.h.bf16 %v78
    %v223 = vunpack.c.l.bf16 %v79
    %v224 = vunpack.c.h.bf16 %v79
    %v225 = vunpack.c.l.bf16 %v80
    %v226 = vunpack.c.h.bf16 %v80
    %v227 = vunpack.c.l.bf16 %v81
    %v228 = vunpack.c.h.bf16 %v81
    %v229 = vunpack.c.l.bf16 %v82
    %v230 = vunpack.c.h.bf16 %v82
    %v231 = vunpack.c.l.bf16 %v83
    %v232 = vunpack.c.h.bf16 %v83
    %v233 = vunpack.c.l.bf16 %v84
    %v234 = vunpack.c.h.bf16 %v84
    %v235 = vunpack.c.l.bf16 %v85
    %v236 = vunpack.c.h.bf16 %v85
    %v237 = vunpack.c.l.bf16 %v86
    %v238 = vunpack.c.h.bf16 %v86
    %v239 = vunpack.c.l.bf16 %v87
    %v240 = vunpack.c.h.bf16 %v87
    %v241 = vunpack.c.l.bf16 %v88
    %v242 = vunpack.c.h.bf16 %v88
    %v243 = vunpack.c.l.bf16 %v89
    %v244 = vunpack.c.h.bf16 %v89
    %v245 = vunpack.c.l.bf16 %v90
    %v246 = vunpack.c.h.bf16 %v90
    %v247 = vunpack.c.l.bf16 %v91
    %v248 = vunpack.c.h.bf16 %v91
    %v249 = vunpack.c.l.bf16 %v92
    %v250 = vunpack.c.h.bf16 %v92
    %v251 = vunpack.c.l.bf16 %v93
    %v252 = vunpack.c.h.bf16 %v93
    %v253 = vunpack.c.l.bf16 %v94
    %v254 = vunpack.c.h.bf16 %v94
    %v255 = vunpack.c.l.bf16 %v95
    %v256 = vunpack.c.h.bf16 %v95
    %v257 = vunpack.c.l.bf16 %v96
    %v258 = vunpack.c.h.bf16 %v96
    %v259 = vunpack.c.l.bf16 %v97
    %v260 = vunpack.c.h.bf16 %v97
    %v261 = vunpack.c.l.bf16 %v98
    %v262 = vunpack.c.h.bf16 %v98
    %v263 = vunpack.c.l.bf16 %v99
    %v264 = vunpack.c.h.bf16 %v99
    %v265 = vunpack.c.l.bf16 %v100
    %v266 = vunpack.c.h.bf16 %v100
    %v267 = vunpack.c.l.bf16 %v101
    %v268 = vunpack.c.h.bf16 %v101
    %v269 = vunpack.c.l.bf16 %v102
    %v270 = vunpack.c.h.bf16 %v102
    %v271 = vunpack.c.l.bf16 %v103
    %v272 = vunpack.c.h.bf16 %v103
    %v273 = vunpack.c.l.bf16 %v104
    %v274 = vunpack.c.h.bf16 %v104
    %v275 = vunpack.c.l.bf16 %v105
    %v276 = vunpack.c.h.bf16 %v105
    %v277 = vunpack.c.l.bf16 %v106
    %v278 = vunpack.c.h.bf16 %v106
    %v279 = vunpack.c.l.bf16 %v107
    %v280 = vunpack.c.h.bf16 %v107
    %v281 = vunpack.c.l.bf16 %v108
    %v282 = vunpack.c.h.bf16 %v108
    %v283 = vunpack.c.l.bf16 %v109
    %v284 = vunpack.c.h.bf16 %v109
    %v285 = vunpack.c.l.bf16 %v110
    %v286 = vunpack.c.h.bf16 %v110
    %v287 = vunpack.c.l.bf16 %v111
    %v288 = vunpack.c.h.bf16 %v111
    %v289 = vunpack.c.l.bf16 %v112
    %v290 = vunpack.c.h.bf16 %v112
    %v291 = vunpack.c.l.bf16 %v113
    %v292 = vunpack.c.h.bf16 %v113
    %v293 = vunpack.c.l.bf16 %v114
    %v294 = vunpack.c.h.bf16 %v114
    %v295 = vunpack.c.l.bf16 %v115
    %v296 = vunpack.c.h.bf16 %v115
    %v297 = vunpack.c.l.bf16 %v116
    %v298 = vunpack.c.h.bf16 %v116
    %v299 = vunpack.c.l.bf16 %v117
    %v300 = vunpack.c.h.bf16 %v117
    %v301 = vunpack.c.l.bf16 %v118
    %v302 = vunpack.c.h.bf16 %v118
    %v303 = vunpack.c.l.bf16 %v119
    %v304 = vunpack.c.h.bf16 %v119
    %v305 = vunpack.c.l.bf16 %v120
    %v306 = vunpack.c.h.bf16 %v120
    %v307 = vunpack.c.l.bf16 %v121
    %v308 = vunpack.c.h.bf16 %v121
    %v309 = vunpack.c.l.bf16 %v122
    %v310 = vunpack.c.h.bf16 %v122
    %v311 = vunpack.c.l.bf16 %v123
    %v312 = vunpack.c.h.bf16 %v123
    %v313 = vunpack.c.l.bf16 %v124
    %v314 = vunpack.c.h.bf16 %v124
    %v315 = vunpack.c.l.bf16 %v125
    %v316 = vunpack.c.h.bf16 %v125
    %v317 = vunpack.c.l.bf16 %v126
    %v318 = vunpack.c.h.bf16 %v126
    %v319 = vunpack.c.l.bf16 %v127
    %v320 = vunpack.c.h.bf16 %v127
    %v321 = vunpack.c.l.bf16 %v128
    %v322 = vunpack.c.h.bf16 %v128
    %v323 = vunpack.c.l.bf16 %v129
    %v324 = vunpack.c.h.bf16 %v129
    %v325 = vunpack.c.l.bf16 %v130
    %v326 = vunpack.c.h.bf16 %v130
    %v327 = vunpack.c.l.bf16 %v131
    %v328 = vunpack.c.h.bf16 %v131
    %v329 = vunpack.c.l.bf16 %v132
    %v330 = vunpack.c.h.bf16 %v132
    %v331 = vunpack.c.l.bf16 %v133
    %v332 = vunpack.c.h.bf16 %v133
    %v333 = vunpack.c.l.bf16 %v134
    %v334 = vunpack.c.h.bf16 %v134
    %v335 = vunpack.c.l.bf16 %v135
    %v336 = vunpack.c.h.bf16 %v135
    %v337 = vunpack.c.l.bf16 %v136
    %v338 = vunpack.c.h.bf16 %v136
    %v339 = vunpack.c.l.bf16 %v137
    %v340 = vunpack.c.h.bf16 %v137
    %v341 = vunpack.c.l.bf16 %v138
    %v342 = vunpack.c.h.bf16 %v138
    %v343 = vunpack.c.l.bf16 %v139
    %v344 = vunpack.c.h.bf16 %v139
    %v345 = vunpack.c.l.bf16 %v140
    %v346 = vunpack.c.h.bf16 %v140
    %v347 = vunpack.c.l.bf16 %v141
    %v348 = vunpack.c.h.bf16 %v141
    %v349 = vunpack.c.l.bf16 %v142
    %v350 = vunpack.c.h.bf16 %v142
    %v351 = vunpack.c.l.bf16 %v143
    %v352 = vunpack.c.h.bf16 %v143
    %v353 = vunpack.c.l.bf16 %v144
    %v354 = vunpack.c.h.bf16 %v144
    %v355 = vunpack.c.l.bf16 %v145
    %v356 = vunpack.c.h.bf16 %v145
    %v357 = vunpack.c.l.bf16 %v146
    %v358 = vunpack.c.h.bf16 %v146
    %v359 = vunpack.c.l.bf16 %v147
    %v360 = vunpack.c.h.bf16 %v147
    %v361 = vunpack.c.l.bf16 %v148
    %v362 = vunpack.c.h.bf16 %v148
    %v363 = vunpack.c.l.bf16 %v149
    %v364 = vunpack.c.h.bf16 %v149
    %v365 = vunpack.c.l.bf16 %v150
    %v366 = vunpack.c.h.bf16 %v150
    %v367 = vunpack.c.l.bf16 %v151
    %v368 = vunpack.c.h.bf16 %v151
    %v369 = vunpack.c.l.bf16 %v152
    %v370 = vunpack.c.h.bf16 %v152
    %v371 = vunpack.c.l.bf16 %v153
    %v372 = vunpack.c.h.bf16 %v153
    %v373 = vunpack.c.l.bf16 %v154
    %v374 = vunpack.c.h.bf16 %v154
    %v375 = vunpack.c.l.bf16 %v155
    %v376 = vunpack.c.h.bf16 %v155
    %v377 = vunpack.c.l.bf16 %v156
    %v378 = vunpack.c.h.bf16 %v156
    %v379 = vunpack.c.l.bf16 %v157
    %v380 = vunpack.c.h.bf16 %v157
    %v381 = vunpack.c.l.bf16 %v158
    %v382 = vunpack.c.h.bf16 %v158
    %v383 = vunpack.c.l.bf16 %v159
    %v384 = vunpack.c.h.bf16 %v159
    %v385 = vunpack.c.l.bf16 %v160
    %v386 = vunpack.c.h.bf16 %v160
    %v387 = vunpack.c.l.bf16 %v161
    %v388 = vunpack.c.h.bf16 %v161
    %v389 = vunpack.c.l.bf16 %v162
    %v390 = vunpack.c.h.bf16 %v162
    %v391 = vunpack.c.l.bf16 %v163
    %v392 = vunpack.c.h.bf16 %v163
    %v393 = vunpack.c.l.bf16 %v164
    %v394 = vunpack.c.h.bf16 %v164
    %v395 = vunpack.c.l.bf16 %v165
    %v396 = vunpack.c.h.bf16 %v165
    %v397 = vunpack.c.l.bf16 %v166
    %v398 = vunpack.c.h.bf16 %v166
    %v399 = vunpack.c.l.bf16 %v167
    %v400 = vunpack.c.h.bf16 %v167
    %v401 = vunpack.c.l.bf16 %v168
    %v402 = vunpack.c.h.bf16 %v168
    %v403 = vunpack.c.l.bf16 %v169
    %v404 = vunpack.c.h.bf16 %v169
    %v405 = vunpack.c.l.bf16 %v170
    %v406 = vunpack.c.h.bf16 %v170
    %v407 = vunpack.c.l.bf16 %v171
    %v408 = vunpack.c.h.bf16 %v171
    %v409 = vunpack.c.l.bf16 %v172
    %v410 = vunpack.c.h.bf16 %v172
    %v411 = vunpack.c.l.bf16 %v173
    %v412 = vunpack.c.h.bf16 %v173
    %v413 = vunpack.c.l.bf16 %v174
    %v414 = vunpack.c.h.bf16 %v174
    %v415 = vunpack.c.l.bf16 %v175
    %v416 = vunpack.c.h.bf16 %v175
    %v417 = vunpack.c.l.bf16 %v176
    %v418 = vunpack.c.h.bf16 %v176
    %v419 = vunpack.c.l.bf16 %v177
    %v420 = vunpack.c.h.bf16 %v177
    %v421 = vunpack.c.l.bf16 %v178
    %v422 = vunpack.c.h.bf16 %v178
    %v423 = vunpack.c.l.bf16 %v179
    %v424 = vunpack.c.h.bf16 %v179
    %v425 = vunpack.c.l.bf16 %v180
    %v426 = vunpack.c.h.bf16 %v180
    %v427 = vunpack.c.l.bf16 %v181
    %v428 = vunpack.c.h.bf16 %v181
    %v429 = vunpack.c.l.bf16 %v182
    %v430 = vunpack.c.h.bf16 %v182
    %v431 = vunpack.c.l.bf16 %v183
    %v432 = vunpack.c.h.bf16 %v183
    %v433 = vunpack.c.l.bf16 %v184
    %v434 = vunpack.c.h.bf16 %v184
    %v435 = vunpack.c.l.bf16 %v185
    %v436 = vunpack.c.h.bf16 %v185
    %v437 = vunpack.c.l.bf16 %v186
    %v438 = vunpack.c.h.bf16 %v186
    %v439 = vunpack.c.l.bf16 %v187
    %v440 = vunpack.c.h.bf16 %v187
    %v441 = vunpack.c.l.bf16 %v188
    %v442 = vunpack.c.h.bf16 %v188
    %v443 = vunpack.c.l.bf16 %v189
    %v444 = vunpack.c.h.bf16 %v189
    %v445 = vunpack.c.l.bf16 %v190
    %v446 = vunpack.c.h.bf16 %v190
    %v447 = vld [vmem:[%s2] sm:$0xf]
    %v449 = vlaneseq
    %v450 = vshrl.u32 %v449, 7
    %v451 = vsub.s32 0, %v450
    %v452 = vrot.slane %v447, %v451
    %v453 = vlaneseq
    %v454 = vshrl.u32 %v453, 7
    %v455 = vsub.s32 1, %v454
    %v456 = vrot.slane %v447, %v455
    %v457 = vlaneseq
    %v458 = vshrl.u32 %v457, 7
    %v459 = vsub.s32 2, %v458
    %v460 = vrot.slane %v447, %v459
    %v461 = vlaneseq
    %v462 = vshrl.u32 %v461, 7
    %v463 = vsub.s32 3, %v462
    %v464 = vrot.slane %v447, %v463
    %469 = vmatprep.subr.mxu0 %v192
    %470 = vmatpush1.msra.mxu0 %v191
    %471 = vmatprep.subr.mxu0 %v196
    %472 = vmatpush1.msra.mxu0 %v195
    %473 = vmatprep.subr.mxu0 %v200
    %474 = vmatpush1.msra.mxu0 %v199
    %475 = vmatprep.subr.mxu0 %v204
    %476 = vmatpush1.msra.mxu0 %v203
    %477 = vmatprep.subr.mxu0 %v208
    %478 = vmatpush1.msra.mxu0 %v207
    %479 = vmatprep.subr.mxu0 %v212
    %480 = vmatpush1.msra.mxu0 %v211
    %481 = vmatprep.subr.mxu0 %v216
    %482 = vmatpush1.msra.mxu0 %v215
    %483 = vmatprep.subr.mxu0 %v220
    %484 = vmatpush1.msra.mxu0 %v219
    %485 = vmatprep.subr.mxu0 %v224
    %486 = vmatpush1.msra.mxu0 %v223
    %487 = vmatprep.subr.mxu0 %v228
    %488 = vmatpush1.msra.mxu0 %v227
    %489 = vmatprep.subr.mxu0 %v232
    %490 = vmatpush1.msra.mxu0 %v231
    %491 = vmatprep.subr.mxu0 %v236
    %492 = vmatpush1.msra.mxu0 %v235
    %493 = vmatprep.subr.mxu0 %v240
    %494 = vmatpush1.msra.mxu0 %v239
    %495 = vmatprep.subr.mxu0 %v244
    %496 = vmatpush1.msra.mxu0 %v243
    %497 = vmatprep.subr.mxu0 %v248
    %498 = vmatpush1.msra.mxu0 %v247
    %499 = vmatprep.subr.mxu0 %v252
    %500 = vmatpush1.msra.mxu0 %v251
    %501 = vmatprep.subr.mxu0 %v256
    %502 = vmatpush1.msra.mxu0 %v255
    %503 = vmatprep.subr.mxu0 %v260
    %504 = vmatpush1.msra.mxu0 %v259
    %505 = vmatprep.subr.mxu0 %v264
    %506 = vmatpush1.msra.mxu0 %v263
    %507 = vmatprep.subr.mxu0 %v268
    %508 = vmatpush1.msra.mxu0 %v267
    %509 = vmatprep.subr.mxu0 %v272
    %510 = vmatpush1.msra.mxu0 %v271
    %511 = vmatprep.subr.mxu0 %v276
    %512 = vmatpush1.msra.mxu0 %v275
    %513 = vmatprep.subr.mxu0 %v280
    %514 = vmatpush1.msra.mxu0 %v279
    %515 = vmatprep.subr.mxu0 %v284
    %516 = vmatpush1.msra.mxu0 %v283
    %517 = vmatprep.subr.mxu0 %v288
    %518 = vmatpush1.msra.mxu0 %v287
    %519 = vmatprep.subr.mxu0 %v292
    %520 = vmatpush1.msra.mxu0 %v291
    %521 = vmatprep.subr.mxu0 %v296
    %522 = vmatpush1.msra.mxu0 %v295
    %523 = vmatprep.subr.mxu0 %v300
    %524 = vmatpush1.msra.mxu0 %v299
    %525 = vmatprep.subr.mxu0 %v304
    %526 = vmatpush1.msra.mxu0 %v303
    %527 = vmatprep.subr.mxu0 %v308
    %528 = vmatpush1.msra.mxu0 %v307
    %529 = vmatprep.subr.mxu0 %v312
    %530 = vmatpush1.msra.mxu0 %v311
    %531 = vmatprep.subr.mxu0 %v316
    %532 = vmatpush1.msra.mxu0 %v315
    %533 = vmatprep.mubr.f32.mxu0 %v60
    %534 = vmatmul.mubr.f32.gmra.mrb[0].mxu0 %v59
    %v535 = vpop.f32.mrb[0].mxu0
    %v536 = vadd.f32 %v452, %v535
    %v537 = vpop.f32.mrb[0].mxu0
    %v538 = vadd.f32 %v456, %v537
    %539 = vdwg.mxu0
    %540 = vmatprep.subr.mxu0 %v320
    %541 = vmatpush1.msra.mxu0 %v319
    %542 = vmatprep.subr.mxu0 %v324
    %543 = vmatpush1.msra.mxu0 %v323
    %544 = vmatprep.subr.mxu0 %v328
    %545 = vmatpush1.msra.mxu0 %v327
    %546 = vmatprep.subr.mxu0 %v332
    %547 = vmatpush1.msra.mxu0 %v331
    %548 = vmatprep.subr.mxu0 %v336
    %549 = vmatpush1.msra.mxu0 %v335
    %550 = vmatprep.subr.mxu0 %v340
    %551 = vmatpush1.msra.mxu0 %v339
    %552 = vmatprep.subr.mxu0 %v344
    %553 = vmatpush1.msra.mxu0 %v343
    %554 = vmatprep.subr.mxu0 %v348
    %555 = vmatpush1.msra.mxu0 %v347
    %556 = vmatprep.subr.mxu0 %v352
    %557 = vmatpush1.msra.mxu0 %v351
    %558 = vmatprep.subr.mxu0 %v356
    %559 = vmatpush1.msra.mxu0 %v355
    %560 = vmatprep.subr.mxu0 %v360
    %561 = vmatpush1.msra.mxu0 %v359
    %562 = vmatprep.subr.mxu0 %v364
    %563 = vmatpush1.msra.mxu0 %v363
    %564 = vmatprep.subr.mxu0 %v368
    %565 = vmatpush1.msra.mxu0 %v367
    %566 = vmatprep.subr.mxu0 %v372
    %567 = vmatpush1.msra.mxu0 %v371
    %568 = vmatprep.subr.mxu0 %v376
    %569 = vmatpush1.msra.mxu0 %v375
    %570 = vmatprep.subr.mxu0 %v380
    %571 = vmatpush1.msra.mxu0 %v379
    %572 = vmatprep.subr.mxu0 %v384
    %573 = vmatpush1.msra.mxu0 %v383
    %574 = vmatprep.subr.mxu0 %v388
    %575 = vmatpush1.msra.mxu0 %v387
    %576 = vmatprep.subr.mxu0 %v392
    %577 = vmatpush1.msra.mxu0 %v391
    %578 = vmatprep.subr.mxu0 %v396
    %579 = vmatpush1.msra.mxu0 %v395
    %580 = vmatprep.subr.mxu0 %v400
    %581 = vmatpush1.msra.mxu0 %v399
    %582 = vmatprep.subr.mxu0 %v404
    %583 = vmatpush1.msra.mxu0 %v403
    %584 = vmatprep.subr.mxu0 %v408
    %585 = vmatpush1.msra.mxu0 %v407
    %586 = vmatprep.subr.mxu0 %v412
    %587 = vmatpush1.msra.mxu0 %v411
    %588 = vmatprep.subr.mxu0 %v416
    %589 = vmatpush1.msra.mxu0 %v415
    %590 = vmatprep.subr.mxu0 %v420
    %591 = vmatpush1.msra.mxu0 %v419
    %592 = vmatprep.subr.mxu0 %v424
    %593 = vmatpush1.msra.mxu0 %v423
    %594 = vmatprep.subr.mxu0 %v428
    %595 = vmatpush1.msra.mxu0 %v427
    %596 = vmatprep.subr.mxu0 %v432
    %597 = vmatpush1.msra.mxu0 %v431
    %598 = vmatprep.subr.mxu0 %v436
    %599 = vmatpush1.msra.mxu0 %v435
    %600 = vmatprep.subr.mxu0 %v440
    %601 = vmatpush1.msra.mxu0 %v439
    %602 = vmatprep.subr.mxu0 %v444
    %603 = vmatpush1.msra.mxu0 %v443
    %604 = vmatprep.mubr.f32.mxu0 %v62
    %605 = vmatmul.mubr.f32.gmra.mrb[0].mxu0 %v61
    %v606 = vpop.f32.mrb[0].mxu0
    %v607 = vadd.f32 %v536, %v606
    %v608 = vpop.f32.mrb[0].mxu0
    %v609 = vadd.f32 %v538, %v608
    %610 = vdwg.mxu0
    %611 = vmatprep.subr.mxu0 %v194
    %612 = vmatpush1.msra.mxu0 %v193
    %613 = vmatprep.subr.mxu0 %v198
    %614 = vmatpush1.msra.mxu0 %v197
    %615 = vmatprep.subr.mxu0 %v202
    %616 = vmatpush1.msra.mxu0 %v201
    %617 = vmatprep.subr.mxu0 %v206
    %618 = vmatpush1.msra.mxu0 %v205
    %619 = vmatprep.subr.mxu0 %v210
    %620 = vmatpush1.msra.mxu0 %v209
    %621 = vmatprep.subr.mxu0 %v214
    %622 = vmatpush1.msra.mxu0 %v213
    %623 = vmatprep.subr.mxu0 %v218
    %624 = vmatpush1.msra.mxu0 %v217
    %625 = vmatprep.subr.mxu0 %v222
    %626 = vmatpush1.msra.mxu0 %v221
    %627 = vmatprep.subr.mxu0 %v226
    %628 = vmatpush1.msra.mxu0 %v225
    %629 = vmatprep.subr.mxu0 %v230
    %630 = vmatpush1.msra.mxu0 %v229
    %631 = vmatprep.subr.mxu0 %v234
    %632 = vmatpush1.msra.mxu0 %v233
    %633 = vmatprep.subr.mxu0 %v238
    %634 = vmatpush1.msra.mxu0 %v237
    %635 = vmatprep.subr.mxu0 %v242
    %636 = vmatpush1.msra.mxu0 %v241
    %637 = vmatprep.subr.mxu0 %v246
    %638 = vmatpush1.msra.mxu0 %v245
    %639 = vmatprep.subr.mxu0 %v250
    %640 = vmatpush1.msra.mxu0 %v249
    %641 = vmatprep.subr.mxu0 %v254
    %642 = vmatpush1.msra.mxu0 %v253
    %643 = vmatprep.subr.mxu0 %v258
    %644 = vmatpush1.msra.mxu0 %v257
    %645 = vmatprep.subr.mxu0 %v262
    %646 = vmatpush1.msra.mxu0 %v261
    %647 = vmatprep.subr.mxu0 %v266
    %648 = vmatpush1.msra.mxu0 %v265
    %649 = vmatprep.subr.mxu0 %v270
    %650 = vmatpush1.msra.mxu0 %v269
    %651 = vmatprep.subr.mxu0 %v274
    %652 = vmatpush1.msra.mxu0 %v273
    %653 = vmatprep.subr.mxu0 %v278
    %654 = vmatpush1.msra.mxu0 %v277
    %655 = vmatprep.subr.mxu0 %v282
    %656 = vmatpush1.msra.mxu0 %v281
    %657 = vmatprep.subr.mxu0 %v286
    %658 = vmatpush1.msra.mxu0 %v285
    %659 = vmatprep.subr.mxu0 %v290
    %660 = vmatpush1.msra.mxu0 %v289
    %661 = vmatprep.subr.mxu0 %v294
    %662 = vmatpush1.msra.mxu0 %v293
    %663 = vmatprep.subr.mxu0 %v298
    %664 = vmatpush1.msra.mxu0 %v297
    %665 = vmatprep.subr.mxu0 %v302
    %666 = vmatpush1.msra.mxu0 %v301
    %667 = vmatprep.subr.mxu0 %v306
    %668 = vmatpush1.msra.mxu0 %v305
    %669 = vmatprep.subr.mxu0 %v310
    %670 = vmatpush1.msra.mxu0 %v309
    %671 = vmatprep.subr.mxu0 %v314
    %672 = vmatpush1.msra.mxu0 %v313
    %673 = vmatprep.subr.mxu0 %v318
    %674 = vmatpush1.msra.mxu0 %v317
    %675 = vmatprep.mubr.f32.mxu0 %v60
    %676 = vmatmul.mubr.f32.gmra.mrb[0].mxu0 %v59
    %v677 = vpop.f32.mrb[0].mxu0
    %v678 = vadd.f32 %v460, %v677
    %v679 = vpop.f32.mrb[0].mxu0
    %v680 = vadd.f32 %v464, %v679
    %681 = vdwg.mxu0
    %682 = vmatprep.subr.mxu0 %v322
    %683 = vmatpush1.msra.mxu0 %v321
    %684 = vmatprep.subr.mxu0 %v326
    %685 = vmatpush1.msra.mxu0 %v325
    %686 = vmatprep.subr.mxu0 %v330
    %687 = vmatpush1.msra.mxu0 %v329
    %688 = vmatprep.subr.mxu0 %v334
    %689 = vmatpush1.msra.mxu0 %v333
    %690 = vmatprep.subr.mxu0 %v338
    %691 = vmatpush1.msra.mxu0 %v337
    %692 = vmatprep.subr.mxu0 %v342
    %693 = vmatpush1.msra.mxu0 %v341
    %694 = vmatprep.subr.mxu0 %v346
    %695 = vmatpush1.msra.mxu0 %v345
    %696 = vmatprep.subr.mxu0 %v350
    %697 = vmatpush1.msra.mxu0 %v349
    %698 = vmatprep.subr.mxu0 %v354
    %699 = vmatpush1.msra.mxu0 %v353
    %700 = vmatprep.subr.mxu0 %v358
    %701 = vmatpush1.msra.mxu0 %v357
    %702 = vmatprep.subr.mxu0 %v362
    %703 = vmatpush1.msra.mxu0 %v361
    %704 = vmatprep.subr.mxu0 %v366
    %705 = vmatpush1.msra.mxu0 %v365
    %706 = vmatprep.subr.mxu0 %v370
    %707 = vmatpush1.msra.mxu0 %v369
    %708 = vmatprep.subr.mxu0 %v374
    %709 = vmatpush1.msra.mxu0 %v373
    %710 = vmatprep.subr.mxu0 %v378
    %711 = vmatpush1.msra.mxu0 %v377
    %712 = vmatprep.subr.mxu0 %v382
    %713 = vmatpush1.msra.mxu0 %v381
    %714 = vmatprep.subr.mxu0 %v386
    %715 = vmatpush1.msra.mxu0 %v385
    %716 = vmatprep.subr.mxu0 %v390
    %717 = vmatpush1.msra.mxu0 %v389
    %718 = vmatprep.subr.mxu0 %v394
    %719 = vmatpush1.msra.mxu0 %v393
    %720 = vmatprep.subr.mxu0 %v398
    %721 = vmatpush1.msra.mxu0 %v397
    %722 = vmatprep.subr.mxu0 %v402
    %723 = vmatpush1.msra.mxu0 %v401
    %724 = vmatprep.subr.mxu0 %v406
    %725 = vmatpush1.msra.mxu0 %v405
    %726 = vmatprep.subr.mxu0 %v410
    %727 = vmatpush1.msra.mxu0 %v409
    %728 = vmatprep.subr.mxu0 %v414
    %729 = vmatpush1.msra.mxu0 %v413
    %730 = vmatprep.subr.mxu0 %v418
    %731 = vmatpush1.msra.mxu0 %v417
    %732 = vmatprep.subr.mxu0 %v422
    %733 = vmatpush1.msra.mxu0 %v421
    %734 = vmatprep.subr.mxu0 %v426
    %735 = vmatpush1.msra.mxu0 %v425
    %736 = vmatprep.subr.mxu0 %v430
    %737 = vmatpush1.msra.mxu0 %v429
    %738 = vmatprep.subr.mxu0 %v434
    %739 = vmatpush1.msra.mxu0 %v433
    %740 = vmatprep.subr.mxu0 %v438
    %741 = vmatpush1.msra.mxu0 %v437
    %742 = vmatprep.subr.mxu0 %v442
    %743 = vmatpush1.msra.mxu0 %v441
    %744 = vmatprep.subr.mxu0 %v446
    %745 = vmatpush1.msra.mxu0 %v445
    %746 = vmatprep.mubr.f32.mxu0 %v62
    %747 = vmatmul.mubr.f32.gmra.mrb[0].mxu0 %v61
    %v748 = vpop.f32.mrb[0].mxu0
    %v749 = vadd.f32 %v678, %v748
    %v750 = vpop.f32.mrb[0].mxu0
    %v751 = vadd.f32 %v680, %v750
    %752 = vdwg.mxu0
    %v753 = vmax.f32 %v607, 0.0
    %v754 = vmax.f32 %v609, 0.0
    %v755 = vmax.f32 %v749, 0.0
    %v756 = vmax.f32 %v751, 0.0
    %v757 = vld [vmem:[#allocation6] sm:$0xff]
    %v758 = vld [vmem:[#allocation6 + $0x8] sm:$0xff]
    %v759 = vld [vmem:[#allocation6 + $0x10] sm:$0xff]
    %v760 = vld [vmem:[#allocation6 + $0x18] sm:$0xff]
    %v761 = vld [vmem:[#allocation6 + $0x20] sm:$0xff]
    %v762 = vld [vmem:[#allocation6 + $0x28] sm:$0xff]
    %v763 = vld [vmem:[#allocation6 + $0x30] sm:$0xff]
    %v764 = vld [vmem:[#allocation6 + $0x38] sm:$0xff]
    %v765 = vld [vmem:[#allocation6 + $0x40] sm:$0xff]
    %v766 = vld [vmem:[#allocation6 + $0x48] sm:$0xff]
    %v767 = vld [vmem:[#allocation6 + $0x50] sm:$0xff]
    %v768 = vld [vmem:[#allocation6 + $0x58] sm:$0xff]
    %v769 = vld [vmem:[#allocation6 + $0x60] sm:$0xff]
    %v770 = vld [vmem:[#allocation6 + $0x68] sm:$0xff]
    %v771 = vld [vmem:[#allocation6 + $0x70] sm:$0xff]
    %v772 = vld [vmem:[#allocation6 + $0x78] sm:$0xff]
    %v773 = vld [vmem:[#allocation6 + $0x80] sm:$0xff]
    %v774 = vld [vmem:[#allocation6 + $0x88] sm:$0xff]
    %v775 = vld [vmem:[#allocation6 + $0x90] sm:$0xff]
    %v776 = vld [vmem:[#allocation6 + $0x98] sm:$0xff]
    %v777 = vld [vmem:[#allocation6 + $0xa0] sm:$0xff]
    %v778 = vld [vmem:[#allocation6 + $0xa8] sm:$0xff]
    %v779 = vld [vmem:[#allocation6 + $0xb0] sm:$0xff]
    %v780 = vld [vmem:[#allocation6 + $0xb8] sm:$0xff]
    %v781 = vld [vmem:[#allocation6 + $0xc0] sm:$0xff]
    %v782 = vld [vmem:[#allocation6 + $0xc8] sm:$0xff]
    %v783 = vld [vmem:[#allocation6 + $0xd0] sm:$0xff]
    %v784 = vld [vmem:[#allocation6 + $0xd8] sm:$0xff]
    %v785 = vld [vmem:[#allocation6 + $0xe0] sm:$0xff]
    %v786 = vld [vmem:[#allocation6 + $0xe8] sm:$0xff]
    %v787 = vld [vmem:[#allocation6 + $0xf0] sm:$0xff]
    %v788 = vld [vmem:[#allocation6 + $0xf8] sm:$0xff]
    %v789 = vld [vmem:[#allocation6 + $0x100] sm:$0xff]
    %v790 = vld [vmem:[#allocation6 + $0x108] sm:$0xff]
    %v791 = vld [vmem:[#allocation6 + $0x110] sm:$0xff]
    %v792 = vld [vmem:[#allocation6 + $0x118] sm:$0xff]
    %v793 = vld [vmem:[#allocation6 + $0x120] sm:$0xff]
    %v794 = vld [vmem:[#allocation6 + $0x128] sm:$0xff]
    %v795 = vld [vmem:[#allocation6 + $0x130] sm:$0xff]
    %v796 = vld [vmem:[#allocation6 + $0x138] sm:$0xff]
    %v797 = vld [vmem:[#allocation6 + $0x140] sm:$0xff]
    %v798 = vld [vmem:[#allocation6 + $0x148] sm:$0xff]
    %v799 = vld [vmem:[#allocation6 + $0x150] sm:$0xff]
    %v800 = vld [vmem:[#allocation6 + $0x158] sm:$0xff]
    %v801 = vld [vmem:[#allocation6 + $0x160] sm:$0xff]
    %v802 = vld [vmem:[#allocation6 + $0x168] sm:$0xff]
    %v803 = vld [vmem:[#allocation6 + $0x170] sm:$0xff]
    %v804 = vld [vmem:[#allocation6 + $0x178] sm:$0xff]
    %v805 = vld [vmem:[#allocation6 + $0x180] sm:$0xff]
    %v806 = vld [vmem:[#allocation6 + $0x188] sm:$0xff]
    %v807 = vld [vmem:[#allocation6 + $0x190] sm:$0xff]
    %v808 = vld [vmem:[#allocation6 + $0x198] sm:$0xff]
    %v809 = vld [vmem:[#allocation6 + $0x1a0] sm:$0xff]
    %v810 = vld [vmem:[#allocation6 + $0x1a8] sm:$0xff]
    %v811 = vld [vmem:[#allocation6 + $0x1b0] sm:$0xff]
    %v812 = vld [vmem:[#allocation6 + $0x1b8] sm:$0xff]
    %v813 = vld [vmem:[#allocation6 + $0x1c0] sm:$0xff]
    %v814 = vld [vmem:[#allocation6 + $0x1c8] sm:$0xff]
    %v815 = vld [vmem:[#allocation6 + $0x1d0] sm:$0xff]
    %v816 = vld [vmem:[#allocation6 + $0x1d8] sm:$0xff]
    %v817 = vld [vmem:[#allocation6 + $0x1e0] sm:$0xff]
    %v818 = vld [vmem:[#allocation6 + $0x1e8] sm:$0xff]
    %v819 = vld [vmem:[#allocation6 + $0x1f0] sm:$0xff]
    %v820 = vld [vmem:[#allocation6 + $0x1f8] sm:$0xff]
    %v821 = vunpack.c.l.bf16 %v757
    %v822 = vunpack.c.h.bf16 %v757
    %v823 = vunpack.c.l.bf16 %v758
    %v824 = vunpack.c.h.bf16 %v758
    %v825 = vunpack.c.l.bf16 %v759
    %v826 = vunpack.c.h.bf16 %v759
    %v827 = vunpack.c.l.bf16 %v760
    %v828 = vunpack.c.h.bf16 %v760
    %v829 = vunpack.c.l.bf16 %v761
    %v830 = vunpack.c.h.bf16 %v761
    %v831 = vunpack.c.l.bf16 %v762
    %v832 = vunpack.c.h.bf16 %v762
    %v833 = vunpack.c.l.bf16 %v763
    %v834 = vunpack.c.h.bf16 %v763
    %v835 = vunpack.c.l.bf16 %v764
    %v836 = vunpack.c.h.bf16 %v764
    %v837 = vunpack.c.l.bf16 %v765
    %v838 = vunpack.c.h.bf16 %v765
    %v839 = vunpack.c.l.bf16 %v766
    %v840 = vunpack.c.h.bf16 %v766
    %v841 = vunpack.c.l.bf16 %v767
    %v842 = vunpack.c.h.bf16 %v767
    %v843 = vunpack.c.l.bf16 %v768
    %v844 = vunpack.c.h.bf16 %v768
    %v845 = vunpack.c.l.bf16 %v769
    %v846 = vunpack.c.h.bf16 %v769
    %v847 = vunpack.c.l.bf16 %v770
    %v848 = vunpack.c.h.bf16 %v770
    %v849 = vunpack.c.l.bf16 %v771
    %v850 = vunpack.c.h.bf16 %v771
    %v851 = vunpack.c.l.bf16 %v772
    %v852 = vunpack.c.h.bf16 %v772
    %v853 = vunpack.c.l.bf16 %v773
    %v854 = vunpack.c.h.bf16 %v773
    %v855 = vunpack.c.l.bf16 %v774
    %v856 = vunpack.c.h.bf16 %v774
    %v857 = vunpack.c.l.bf16 %v775
    %v858 = vunpack.c.h.bf16 %v775
    %v859 = vunpack.c.l.bf16 %v776
    %v860 = vunpack.c.h.bf16 %v776
    %v861 = vunpack.c.l.bf16 %v777
    %v862 = vunpack.c.h.bf16 %v777
    %v863 = vunpack.c.l.bf16 %v778
    %v864 = vunpack.c.h.bf16 %v778
    %v865 = vunpack.c.l.bf16 %v779
    %v866 = vunpack.c.h.bf16 %v779
    %v867 = vunpack.c.l.bf16 %v780
    %v868 = vunpack.c.h.bf16 %v780
    %v869 = vunpack.c.l.bf16 %v781
    %v870 = vunpack.c.h.bf16 %v781
    %v871 = vunpack.c.l.bf16 %v782
    %v872 = vunpack.c.h.bf16 %v782
    %v873 = vunpack.c.l.bf16 %v783
    %v874 = vunpack.c.h.bf16 %v783
    %v875 = vunpack.c.l.bf16 %v784
    %v876 = vunpack.c.h.bf16 %v784
    %v877 = vunpack.c.l.bf16 %v785
    %v878 = vunpack.c.h.bf16 %v785
    %v879 = vunpack.c.l.bf16 %v786
    %v880 = vunpack.c.h.bf16 %v786
    %v881 = vunpack.c.l.bf16 %v787
    %v882 = vunpack.c.h.bf16 %v787
    %v883 = vunpack.c.l.bf16 %v788
    %v884 = vunpack.c.h.bf16 %v788
    %v885 = vunpack.c.l.bf16 %v789
    %v886 = vunpack.c.h.bf16 %v789
    %v887 = vunpack.c.l.bf16 %v790
    %v888 = vunpack.c.h.bf16 %v790
    %v889 = vunpack.c.l.bf16 %v791
    %v890 = vunpack.c.h.bf16 %v791
    %v891 = vunpack.c.l.bf16 %v792
    %v892 = vunpack.c.h.bf16 %v792
    %v893 = vunpack.c.l.bf16 %v793
    %v894 = vunpack.c.h.bf16 %v793
    %v895 = vunpack.c.l.bf16 %v794
    %v896 = vunpack.c.h.bf16 %v794
    %v897 = vunpack.c.l.bf16 %v795
    %v898 = vunpack.c.h.bf16 %v795
    %v899 = vunpack.c.l.bf16 %v796
    %v900 = vunpack.c.h.bf16 %v796
    %v901 = vunpack.c.l.bf16 %v797
    %v902 = vunpack.c.h.bf16 %v797
    %v903 = vunpack.c.l.bf16 %v798
    %v904 = vunpack.c.h.bf16 %v798
    %v905 = vunpack.c.l.bf16 %v799
    %v906 = vunpack.c.h.bf16 %v799
    %v907 = vunpack.c.l.bf16 %v800
    %v908 = vunpack.c.h.bf16 %v800
    %v909 = vunpack.c.l.bf16 %v801
    %v910 = vunpack.c.h.bf16 %v801
    %v911 = vunpack.c.l.bf16 %v802
    %v912 = vunpack.c.h.bf16 %v802
    %v913 = vunpack.c.l.bf16 %v803
    %v914 = vunpack.c.h.bf16 %v803
    %v915 = vunpack.c.l.bf16 %v804
    %v916 = vunpack.c.h.bf16 %v804
    %v917 = vunpack.c.l.bf16 %v805
    %v918 = vunpack.c.h.bf16 %v805
    %v919 = vunpack.c.l.bf16 %v806
    %v920 = vunpack.c.h.bf16 %v806
    %v921 = vunpack.c.l.bf16 %v807
    %v922 = vunpack.c.h.bf16 %v807
    %v923 = vunpack.c.l.bf16 %v808
    %v924 = vunpack.c.h.bf16 %v808
    %v925 = vunpack.c.l.bf16 %v809
    %v926 = vunpack.c.h.bf16 %v809
    %v927 = vunpack.c.l.bf16 %v810
    %v928 = vunpack.c.h.bf16 %v810
    %v929 = vunpack.c.l.bf16 %v811
    %v930 = vunpack.c.h.bf16 %v811
    %v931 = vunpack.c.l.bf16 %v812
    %v932 = vunpack.c.h.bf16 %v812
    %v933 = vunpack.c.l.bf16 %v813
    %v934 = vunpack.c.h.bf16 %v813
    %v935 = vunpack.c.l.bf16 %v814
    %v936 = vunpack.c.h.bf16 %v814
    %v937 = vunpack.c.l.bf16 %v815
    %v938 = vunpack.c.h.bf16 %v815
    %v939 = vunpack.c.l.bf16 %v816
    %v940 = vunpack.c.h.bf16 %v816
    %v941 = vunpack.c.l.bf16 %v817
    %v942 = vunpack.c.h.bf16 %v817
    %v943 = vunpack.c.l.bf16 %v818
    %v944 = vunpack.c.h.bf16 %v818
    %v945 = vunpack.c.l.bf16 %v819
    %v946 = vunpack.c.h.bf16 %v819
    %v947 = vunpack.c.l.bf16 %v820
    %v948 = vunpack.c.h.bf16 %v820
    %v949 = vld [vmem:[%s4] sm:$0x3]
    %v951 = vlaneseq
    %v952 = vshrl.u32 %v951, 7
    %v953 = vsub.s32 0, %v952
    %v954 = vrot.slane %v949, %v953
    %v955 = vlaneseq
    %v956 = vshrl.u32 %v955, 7
    %v957 = vsub.s32 1, %v956
    %v958 = vrot.slane %v949, %v957
    %961 = vmatprep.subr.mxu0 %v822
    %962 = vmatpush1.msra.mxu0 %v821
    %963 = vmatprep.subr.mxu0 %v824
    %964 = vmatpush1.msra.mxu0 %v823
    %965 = vmatprep.subr.mxu0 %v826
    %966 = vmatpush1.msra.mxu0 %v825
    %967 = vmatprep.subr.mxu0 %v828
    %968 = vmatpush1.msra.mxu0 %v827
    %969 = vmatprep.subr.mxu0 %v830
    %970 = vmatpush1.msra.mxu0 %v829
    %971 = vmatprep.subr.mxu0 %v832
    %972 = vmatpush1.msra.mxu0 %v831
    %973 = vmatprep.subr.mxu0 %v834
    %974 = vmatpush1.msra.mxu0 %v833
    %975 = vmatprep.subr.mxu0 %v836
    %976 = vmatpush1.msra.mxu0 %v835
    %977 = vmatprep.subr.mxu0 %v838
    %978 = vmatpush1.msra.mxu0 %v837
    %979 = vmatprep.subr.mxu0 %v840
    %980 = vmatpush1.msra.mxu0 %v839
    %981 = vmatprep.subr.mxu0 %v842
    %982 = vmatpush1.msra.mxu0 %v841
    %983 = vmatprep.subr.mxu0 %v844
    %984 = vmatpush1.msra.mxu0 %v843
    %985 = vmatprep.subr.mxu0 %v846
    %986 = vmatpush1.msra.mxu0 %v845
    %987 = vmatprep.subr.mxu0 %v848
    %988 = vmatpush1.msra.mxu0 %v847
    %989 = vmatprep.subr.mxu0 %v850
    %990 = vmatpush1.msra.mxu0 %v849
    %991 = vmatprep.subr.mxu0 %v852
    %992 = vmatpush1.msra.mxu0 %v851
    %993 = vmatprep.subr.mxu0 %v854
    %994 = vmatpush1.msra.mxu0 %v853
    %995 = vmatprep.subr.mxu0 %v856
    %996 = vmatpush1.msra.mxu0 %v855
    %997 = vmatprep.subr.mxu0 %v858
    %998 = vmatpush1.msra.mxu0 %v857
    %999 = vmatprep.subr.mxu0 %v860
    %1000 = vmatpush1.msra.mxu0 %v859
    %1001 = vmatprep.subr.mxu0 %v862
    %1002 = vmatpush1.msra.mxu0 %v861
    %1003 = vmatprep.subr.mxu0 %v864
    %1004 = vmatpush1.msra.mxu0 %v863
    %1005 = vmatprep.subr.mxu0 %v866
    %1006 = vmatpush1.msra.mxu0 %v865
    %1007 = vmatprep.subr.mxu0 %v868
    %1008 = vmatpush1.msra.mxu0 %v867
    %1009 = vmatprep.subr.mxu0 %v870
    %1010 = vmatpush1.msra.mxu0 %v869
    %1011 = vmatprep.subr.mxu0 %v872
    %1012 = vmatpush1.msra.mxu0 %v871
    %1013 = vmatprep.subr.mxu0 %v874
    %1014 = vmatpush1.msra.mxu0 %v873
    %1015 = vmatprep.subr.mxu0 %v876
    %1016 = vmatpush1.msra.mxu0 %v875
    %1017 = vmatprep.subr.mxu0 %v878
    %1018 = vmatpush1.msra.mxu0 %v877
    %1019 = vmatprep.subr.mxu0 %v880
    %1020 = vmatpush1.msra.mxu0 %v879
    %1021 = vmatprep.subr.mxu0 %v882
    %1022 = vmatpush1.msra.mxu0 %v881
    %1023 = vmatprep.subr.mxu0 %v884
    %1024 = vmatpush1.msra.mxu0 %v883
    %1025 = vmatprep.mubr.f32.mxu0 %v754
    %1026 = vmatmul.mubr.f32.gmra.mrb[0].mxu0 %v753
    %v1027 = vpop.f32.mrb[0].mxu0
    %v1028 = vadd.f32 %v954, %v1027
    %v1029 = vpop.f32.mrb[0].mxu0
    %v1030 = vadd.f32 %v958, %v1029
    %1031 = vdwg.mxu0
    %1032 = vmatprep.subr.mxu0 %v886
    %1033 = vmatpush1.msra.mxu0 %v885
    %1034 = vmatprep.subr.mxu0 %v888
    %1035 = vmatpush1.msra.mxu0 %v887
    %1036 = vmatprep.subr.mxu0 %v890
    %1037 = vmatpush1.msra.mxu0 %v889
    %1038 = vmatprep.subr.mxu0 %v892
    %1039 = vmatpush1.msra.mxu0 %v891
    %1040 = vmatprep.subr.mxu0 %v894
    %1041 = vmatpush1.msra.mxu0 %v893
    %1042 = vmatprep.subr.mxu0 %v896
    %1043 = vmatpush1.msra.mxu0 %v895
    %1044 = vmatprep.subr.mxu0 %v898
    %1045 = vmatpush1.msra.mxu0 %v897
    %1046 = vmatprep.subr.mxu0 %v900
    %1047 = vmatpush1.msra.mxu0 %v899
    %1048 = vmatprep.subr.mxu0 %v902
    %1049 = vmatpush1.msra.mxu0 %v901
    %1050 = vmatprep.subr.mxu0 %v904
    %1051 = vmatpush1.msra.mxu0 %v903
    %1052 = vmatprep.subr.mxu0 %v906
    %1053 = vmatpush1.msra.mxu0 %v905
    %1054 = vmatprep.subr.mxu0 %v908
    %1055 = vmatpush1.msra.mxu0 %v907
    %1056 = vmatprep.subr.mxu0 %v910
    %1057 = vmatpush1.msra.mxu0 %v909
    %1058 = vmatprep.subr.mxu0 %v912
    %1059 = vmatpush1.msra.mxu0 %v911
    %1060 = vmatprep.subr.mxu0 %v914
    %1061 = vmatpush1.msra.mxu0 %v913
    %1062 = vmatprep.subr.mxu0 %v916
    %1063 = vmatpush1.msra.mxu0 %v915
    %1064 = vmatprep.subr.mxu0 %v918
    %1065 = vmatpush1.msra.mxu0 %v917
    %1066 = vmatprep.subr.mxu0 %v920
    %1067 = vmatpush1.msra.mxu0 %v919
    %1068 = vmatprep.subr.mxu0 %v922
    %1069 = vmatpush1.msra.mxu0 %v921
    %1070 = vmatprep.subr.mxu0 %v924
    %1071 = vmatpush1.msra.mxu0 %v923
    %1072 = vmatprep.subr.mxu0 %v926
    %1073 = vmatpush1.msra.mxu0 %v925
    %1074 = vmatprep.subr.mxu0 %v928
    %1075 = vmatpush1.msra.mxu0 %v927
    %1076 = vmatprep.subr.mxu0 %v930
    %1077 = vmatpush1.msra.mxu0 %v929
    %1078 = vmatprep.subr.mxu0 %v932
    %1079 = vmatpush1.msra.mxu0 %v931
    %1080 = vmatprep.subr.mxu0 %v934
    %1081 = vmatpush1.msra.mxu0 %v933
    %1082 = vmatprep.subr.mxu0 %v936
    %1083 = vmatpush1.msra.mxu0 %v935
    %1084 = vmatprep.subr.mxu0 %v938
    %1085 = vmatpush1.msra.mxu0 %v937
    %1086 = vmatprep.subr.mxu0 %v940
    %1087 = vmatpush1.msra.mxu0 %v939
    %1088 = vmatprep.subr.mxu0 %v942
    %1089 = vmatpush1.msra.mxu0 %v941
    %1090 = vmatprep.subr.mxu0 %v944
    %1091 = vmatpush1.msra.mxu0 %v943
    %1092 = vmatprep.subr.mxu0 %v946
    %1093 = vmatpush1.msra.mxu0 %v945
    %1094 = vmatprep.subr.mxu0 %v948
    %1095 = vmatpush1.msra.mxu0 %v947
    %1096 = vmatprep.mubr.f32.mxu0 %v756
    %1097 = vmatmul.mubr.f32.gmra.mrb[0].mxu0 %v755
    %v1098 = vpop.f32.mrb[0].mxu0
    %v1099 = vadd.f32 %v1028, %v1098
    %v1100 = vpop.f32.mrb[0].mxu0
    %v1101 = vadd.f32 %v1030, %v1100
    %1102 = vdwg.mxu0
    %1103 = vst [vmem:[%s5] sm:$0xff] %v1099
    %1104 = vst [vmem:[%s5 + $0x8] sm:$0xff] %v1101
    // Predicated region
    $region34: #{classifier_heads.1} parent=1 // pred_check
      _
    $region35: #{classifier_heads.1} parent=1 // pred_check_branch
      %1106 = sbr.rel (0) target = $region37
    $region36: #{classifier_heads.1} parent=1 // pred_region
      _
    $region37: #{classifier_heads.1} parent=1 // pred_fallthru
      _
    // Predicated region
    $region38: #{classifier_heads.1} parent=1 // pred_check
      _
    $region39: #{classifier_heads.1} parent=1 // pred_check_branch
      %1108 = sbr.rel (0) target = $region41
    $region40: #{classifier_heads.1} parent=1 // pred_region
      _
    $region41: #{classifier_heads.1} parent=1 // pred_fallthru
      _
    %1109 = vsyncpa [#allocation3], 1
    %1110 = vsyncpa [#allocation5], 1

</llo_original>
